<compile_context>
chip_gen: v6e
topology: v6e:2x2x1
jax: 0.10.0
libtpu: 0.0.40
codegen_flags: <defaults>
</compile_context>

<pallas_src>
import jax
import jax.numpy as jnp
from jax.experimental import pallas as pl
from jax.experimental.pallas import tpu as pltpu


# --------------------------------------------------------------------------------------
# Kernels
# --------------------------------------------------------------------------------------

def _rpl_kernel_f32_out(x_ref, w_ref, b_ref, o_ref):
    """f32 output: the resident output tile doubles as the (simulated all-reduce) accumulator.

    Bias initializes the accumulator at k==0, so there is no epilogue RMW over the output tile
    (pure vld/vst saving; matters most on v5e's single vector-store slot)."""
    k = pl.program_id(2)

    @pl.when(k == 0)
    def _():
        o_ref[...] = jnp.broadcast_to(b_ref[...], o_ref.shape)

    o_ref[...] += jnp.dot(x_ref[...], w_ref[...], preferred_element_type=jnp.float32)


def _rpl_kernel_acc(x_ref, w_ref, b_ref, o_ref, acc_ref):
    """Narrow output dtype: f32 VMEM accumulator (bias-initialized), cast on the last K step."""
    k = pl.program_id(2)

    @pl.when(k == 0)
    def _():
        acc_ref[...] = jnp.broadcast_to(b_ref[...], acc_ref.shape)

    acc_ref[...] += jnp.dot(x_ref[...], w_ref[...], preferred_element_type=jnp.float32)

    @pl.when(k == pl.num_programs(2) - 1)
    def _():
        o_ref[...] = acc_ref[...].astype(o_ref.dtype)


# --------------------------------------------------------------------------------------
# Wrapper
# --------------------------------------------------------------------------------------

def _round_up(a, m):
    return ((a + m - 1) // m) * m


def _vmem_budget():
    """Per-generation VMEM sizing: budget the multi-buffered tile footprint against physical
    VMEM (v7x has only 64 MiB) and raise the scoped limit explicitly (v5e defaults to 16 MiB)."""
    try:
        cap = int(pltpu.get_tpu_info().vmem_capacity_bytes)
        if cap <= 0:
            cap = 64 << 20
    except Exception:
        cap = 64 << 20                               # conservative fallback (v7x-sized)
    budget = min(int(cap * 0.75), 96 << 20)          # ~48 MiB on v7x, ~96 MiB on v5e/v6e
    limit = int(min(cap, budget + (16 << 20), 128 << 20))
    return budget, limit


def prepare_row_parallel_weight(weight, compute_dtype=None):
    """Reformat the torch-layout weight (out_features, in_features) to a lane-dense,
    MXU-friendly (in_features, out_features) array in the compute dtype.

    Do this ONCE at parameter-load time; doing it per call costs a full HBM read+write of the
    weight before every kernel launch (can ~double wall time for mem-bound decode shapes)."""
    if compute_dtype is None:
        compute_dtype = jnp.bfloat16 if weight.dtype == jnp.float32 else weight.dtype
    return jnp.asarray(weight).T.astype(compute_dtype)


def row_parallel_linear(x, weight, bias, world_size, *,
                        compute_dtype=None, out_dtype=None,
                        weight_is_prepared=False,
                        tm=512, tn=512, tk=1024):
    """Y = X @ W^T (+ b), with W row-parallel over `world_size` simulated TP ranks.

    x:      (..., in_features)
    weight: (out_features, in_features) torch layout, or (in_features, out_features) if
            weight_is_prepared=True (see prepare_row_parallel_weight).
    bias:   (out_features,) or None.
    """
    *lead, K = x.shape
    assert K % world_size == 0, "ensure_divisibility(in_features, world_size)"
    k_shard = K // world_size

    M = 1
    for d in lead:
        M *= int(d)

    if compute_dtype is None:
        # MXU is bf16-native on v5e/v6e/v7x; keep f32 accumulation in the kernel.
        compute_dtype = jnp.bfloat16 if x.dtype == jnp.float32 else x.dtype
    if out_dtype is None:
        out_dtype = x.dtype

    x2d = x.reshape(M, K)
    if x2d.dtype != jnp.dtype(compute_dtype):
        x2d = x2d.astype(compute_dtype)

    if weight_is_prepared:
        K_w, N = weight.shape
        w_kn = weight
        if w_kn.dtype != jnp.dtype(compute_dtype):
            w_kn = w_kn.astype(compute_dtype)
    else:
        # Slow path: per-call transpose+cast (full HBM read+write of the weight).
        # Prefer prepare_row_parallel_weight() once at parameter load.
        N, K_w = weight.shape
        w_kn = jnp.asarray(weight).T.astype(compute_dtype)
    assert K_w == K, "weight in_features must match x"

    b_vec = bias if bias is not None else jnp.zeros((N,), jnp.float32)
    b2d = b_vec.astype(jnp.float32).reshape(1, N)

    # ----- tile selection under a per-generation VMEM budget -----------------------------
    comp_isz = jnp.dtype(compute_dtype).itemsize
    out_isz = jnp.dtype(out_dtype).itemsize
    out_is_f32 = jnp.dtype(out_dtype) == jnp.dtype(jnp.float32)
    # sublane packing alignment for M: bf16 packs 16 rows/vreg, int8/fp8 pack 32, f32 packs 8.
    align_m = 32 if comp_isz == 1 else (16 if comp_isz == 2 else 8)

    budget, vmem_limit = _vmem_budget()

    # Default tiles are 256-multiples (friendly to the 2x256^2 MXU on v6e/v7x). When a dim is
    # smaller than the preferred tile we take the minimally padded dim instead (less padding
    # beats 256-alignment there).
    tm_e = min(tm, _round_up(M, align_m))
    tn_e = min(tn, _round_up(N, 128))
    tk_e = min(tk, _round_up(k_shard, 128))

    def footprint(tm_, tn_, tk_, w_bufs):
        f = (2 * tm_ * tk_ * comp_isz            # X, double-buffered
             + w_bufs * tk_ * tn_ * comp_isz     # W stream
             + 2 * tm_ * tn_ * out_isz           # output tile
             + 2 * tn_ * 4)                      # bias
        if not out_is_f32:
            f += tm_ * tn_ * 4                   # f32 accumulator scratch
        return f

    while footprint(tm_e, tn_e, tk_e, 2) > budget:
        if tk_e > 256:
            tk_e = max(256, ((tk_e // 2) // 128) * 128)
        elif tn_e > 256:
            tn_e = max(256, ((tn_e // 2) // 128) * 128)
        elif tm_e > align_m:
            tm_e = max(align_m, ((tm_e // 2) // align_m) * align_m)
        else:
            break

    # ----- padding (no full-dimension fallbacks) ------------------------------------------
    M_p = _round_up(M, tm_e)
    N_p = _round_up(N, tn_e)
    ks_p = _round_up(k_shard, tk_e)     # pad per simulated-rank shard, keeps rank boundaries tiled
    K_p = world_size * ks_p

    # Decode-style shapes: expose >=2 blocks on the "parallel" axes so v7x's 2nd TC gets work.
    if M_p // tm_e == 1 and N_p // tn_e == 1 and N_p >= 256:
        tn_e = max(128, ((N_p // 2) // 128) * 128)
        N_p = _round_up(N, tn_e)

    if M_p != M or ks_p != k_shard:
        x3 = x2d.reshape(M, world_size, k_shard)
        x3 = jnp.pad(x3, ((0, M_p - M), (0, 0), (0, ks_p - k_shard)))
        x2d = x3.reshape(M_p, K_p)
    if N_p != N or ks_p != k_shard:
        # TODO(synk): for static deployments store the prepared weight pre-padded so this pad,
        # like the transpose, happens once at load instead of per call.
        w3 = w_kn.reshape(world_size, k_shard, N)
        w3 = jnp.pad(w3, ((0, 0), (0, ks_p - k_shard), (0, N_p - N)))
        w_kn = w3.reshape(K_p, N_p)
    if N_p != N:
        b2d = jnp.pad(b2d, ((0, 0), (0, N_p - N)))

    grid = (M_p // tm_e, N_p // tn_e, K_p // tk_e)
    grid_m, grid_n, grid_k = grid

    # HBM-bound decode shapes: per-step compute is too short to hide the weight-stream DMA;
    # add a 3rd buffer on W when the extra tile still fits the VMEM budget.
    deep_w = (M_p <= 256 and grid_k >= 3
              and footprint(tm_e, tn_e, tk_e, 3) <= budget)
    if deep_w:
        w_spec = pl.BlockSpec((tk_e, tn_e), lambda i, j, k: (k, j),
                              pipeline_mode=pl.Buffered(3))
    else:
        w_spec = pl.BlockSpec((tk_e, tn_e), lambda i, j, k: (k, j))

    if out_is_f32:
        kernel = _rpl_kernel_f32_out
        scratch_shapes = []
    else:
        kernel = _rpl_kernel_acc
        scratch_shapes = [pltpu.VMEM((tm_e, tn_e), jnp.float32)]

    # Bytes account for re-streaming: X is read once per N-tile, W once per M-tile.
    cost = pl.CostEstimate(
        flops=2 * M_p * N_p * K_p,
        transcendentals=0,
        bytes_accessed=(grid_n * M_p * K_p + grid_m * K_p * N_p) * comp_isz
        + N_p * 4 + M_p * N_p * out_isz,
    )

    out_p = pl.pallas_call(
        kernel,
        out_shape=jax.ShapeDtypeStruct((M_p, N_p), out_dtype),
        grid_spec=pltpu.PrefetchScalarGridSpec(
            num_scalar_prefetch=0,
            grid=grid,
            in_specs=[
                pl.BlockSpec((tm_e, tk_e), lambda i, j, k: (i, k)),   # X tile
                w_spec,                                               # A tile (pre-transposed W)
                pl.BlockSpec((1, tn_e), lambda i, j, k: (0, j)),      # bias (consumed at k==0)
            ],
            out_specs=pl.BlockSpec((tm_e, tn_e), lambda i, j, k: (i, j)),
            scratch_shapes=scratch_shapes,
        ),
        compiler_params=pltpu.CompilerParams(
            dimension_semantics=("parallel", "parallel", "arbitrary"),
            vmem_limit_bytes=vmem_limit,
        ),
        cost_estimate=cost,
    )(x2d, w_kn, b2d)

    out2d = out_p[:M, :N] if (M_p != M or N_p != N) else out_p
    return out2d.reshape(*lead, N)


# --------------------------------------------------------------------------------------
# Demo / correctness checks
# --------------------------------------------------------------------------------------

if __name__ == "__main__":
    # batch=2, seq=8, in_features=256, out_features=128, simulated TP world_size=2 (k_shard=128).
    batch, seq = 2, 8
    in_features, out_features = 256, 128
    world_size = 2

    key = jax.random.PRNGKey(0)
    kx, kw, kb = jax.random.split(key, 3)
    x = jax.random.normal(kx, (batch, seq, in_features), dtype=jnp.float32)
    weight = jax.random.normal(kw, (out_features, in_features), dtype=jnp.float32) * 0.02
    bias = jax.random.normal(kb, (out_features,), dtype=jnp.float32) * 0.1

    ref = x @ weight.T + bias
    ref_bf = (x.astype(jnp.bfloat16).astype(jnp.float32)
              @ weight.astype(jnp.bfloat16).astype(jnp.float32).T + bias)

    # 1) Fast default path: bf16 compute (f32 accumulation), weight prepared ONCE outside the
    #    hot path (no per-call transpose/cast).
    w_prepared = prepare_row_parallel_weight(weight)            # (K, N) bf16, do at param load
    out = jax.block_until_ready(
        row_parallel_linear(x, w_prepared, bias, world_size, weight_is_prepared=True))
    assert out.shape == (batch, seq, out_features)
    assert out.dtype == jnp.float32
    assert jnp.allclose(out, ref_bf, atol=5e-3, rtol=5e-3), "bf16-compute mismatch"

    # 2) Exact f32 compute path (accumulates directly in the resident output tile, no scratch).
    out_f32 = jax.block_until_ready(
        row_parallel_linear(x, weight, bias, world_size, compute_dtype=jnp.float32))
    assert jnp.allclose(out_f32, ref, atol=1e-4, rtol=1e-4), "f32 mismatch vs reference"

    # 3) bf16 in / bf16 out (exercises the f32-scratch accumulator path).
    out_b16 = jax.block_until_ready(
        row_parallel_linear(x.astype(jnp.bfloat16), weight.astype(jnp.bfloat16),
                            bias, world_size))
    assert out_b16.dtype == jnp.bfloat16
    assert jnp.allclose(out_b16.astype(jnp.float32), ref_bf, atol=5e-2, rtol=5e-2), \
        "bf16-output mismatch"

    # 4) Unaligned shapes: exercises the zero-padding path (M=14, N=100, K per shard=125).
    in2, out2, ws2 = 250, 100, 2
    x2 = jax.random.normal(kx, (2, 7, in2), dtype=jnp.float32)
    w2 = jax.random.normal(kw, (out2, in2), dtype=jnp.float32) * 0.02
    b2 = jax.random.normal(kb, (out2,), dtype=jnp.float32) * 0.1
    ref2 = x2 @ w2.T + b2
    out_pad = jax.block_until_ready(
        row_parallel_linear(x2, w2, b2, ws2, compute_dtype=jnp.float32))
    assert out_pad.shape == (2, 7, out2)
    assert jnp.allclose(out_pad, ref2, atol=1e-4, rtol=1e-4), "padded-shape mismatch"

    print("KERNEL_OK")
</pallas_src>

<mosaic_0001>
module attributes {stable_mosaic.version = 11 : i64} {
  func.func @_rpl_kernel_f32_out(%arg0: i32, %arg1: i32, %arg2: i32, %arg3: memref<16x128xbf16, #tpu.memory_space<vmem>>, %arg4: memref<128x128xbf16, #tpu.memory_space<vmem>>, %arg5: memref<1x128xf32, #tpu.memory_space<vmem>>, %arg6: memref<16x128xf32, #tpu.memory_space<vmem>>) attributes {dimension_semantics = [#tpu.dimension_semantics<parallel>, #tpu.dimension_semantics<parallel>, #tpu.dimension_semantics<arbitrary>], iteration_bounds = array<i64: 1, 1, 2>, scalar_prefetch = 0 : i64, scratch_operands = 0 : i64, tpu.core_type = #tpu.core_type<tc>, window_params = [{transform_indices = @transform_0, window_bounds = array<i64: 16, 128>}, {transform_indices = @transform_1, window_bounds = array<i64: 128, 128>}, {transform_indices = @transform_2, window_bounds = array<i64: 1, 128>}, {transform_indices = @transform_3, window_bounds = array<i64: 16, 128>}]} {
    %c0_i32 = arith.constant 0 : i32
    %0 = arith.cmpi eq, %arg2, %c0_i32 : i32
    %1 = arith.extui %0 : i1 to i32
    %c0_i32_0 = arith.constant 0 : i32
    %2 = arith.cmpi ne, %1, %c0_i32_0 : i32
    scf.if %2 {
      %c0_8 = arith.constant 0 : index
      %c0_9 = arith.constant 0 : index
      %9 = vector.load %arg5[%c0_8, %c0_9] : memref<1x128xf32, #tpu.memory_space<vmem>>, vector<1x128xf32>
      %10 = vector.shape_cast %9 : vector<1x128xf32> to vector<1x128xf32>
      %11 = vector.broadcast %10 : vector<1x128xf32> to vector<16x128xf32>
      %c0_10 = arith.constant 0 : index
      %c0_11 = arith.constant 0 : index
      %12 = vector.load %arg6[%c0_10, %c0_11] : memref<16x128xf32, #tpu.memory_space<vmem>>, vector<16x128xf32>
      tpu.vector_store %arg6[%c0_10, %c0_11], %11 {strides = array<i32>} : memref<16x128xf32, #tpu.memory_space<vmem>>, vector<16x128xf32>,
    } else {
    }
    %c0 = arith.constant 0 : index
    %c0_1 = arith.constant 0 : index
    %3 = vector.load %arg6[%c0, %c0_1] : memref<16x128xf32, #tpu.memory_space<vmem>>, vector<16x128xf32>
    %c0_2 = arith.constant 0 : index
    %c0_3 = arith.constant 0 : index
    %4 = vector.load %arg3[%c0_2, %c0_3] : memref<16x128xbf16, #tpu.memory_space<vmem>>, vector<16x128xbf16>
    %c0_4 = arith.constant 0 : index
    %c0_5 = arith.constant 0 : index
    %5 = vector.load %arg4[%c0_4, %c0_5] : memref<128x128xbf16, #tpu.memory_space<vmem>>, vector<128x128xbf16>
    %cst = arith.constant dense<0.000000e+00> : vector<16x128xf32>
    %6 = tpu.matmul %4, %5, %cst {dimension_numbers = #tpu.dot_dimension_numbers<[1], [0], [0], [1], [0, 0, 1, 1], [], []>} : vector<16x128xbf16>, vector<128x128xbf16>, vector<16x128xf32> -> vector<16x128xf32>
    %7 = arith.addf %3, %6 : vector<16x128xf32>
    %c0_6 = arith.constant 0 : index
    %c0_7 = arith.constant 0 : index
    %8 = vector.load %arg6[%c0_6, %c0_7] : memref<16x128xf32, #tpu.memory_space<vmem>>, vector<16x128xf32>
    tpu.vector_store %arg6[%c0_6, %c0_7], %7 {strides = array<i32>} : memref<16x128xf32, #tpu.memory_space<vmem>>, vector<16x128xf32>,
    return
  }
  func.func @transform_0(%arg0: i32, %arg1: i32, %arg2: i32) -> (i32, i32) {
    %c0_i32 = arith.constant 0 : i32
    return %arg0, %arg2 : i32, i32
  }
  func.func @transform_1(%arg0: i32, %arg1: i32, %arg2: i32) -> (i32, i32) {
    %c0_i32 = arith.constant 0 : i32
    return %arg2, %arg1 : i32, i32
  }
  func.func @transform_2(%arg0: i32, %arg1: i32, %arg2: i32) -> (i32, i32) {
    %c0_i32 = arith.constant 0 : i32
    %c0_i32_0 = arith.constant 0 : i32
    return %c0_i32, %arg1 : i32, i32
  }
  func.func @transform_3(%arg0: i32, %arg1: i32, %arg2: i32) -> (i32, i32) {
    %c0_i32 = arith.constant 0 : i32
    return %arg0, %arg1 : i32, i32
  }
}

</mosaic_0001>

<llo_original>
// kernel: tpu_custom_call.1
$region0: #{tpu_custom_call.1}
  #allocation0 [shape = 'u32[]', space=smem, size = 0x4, offset = 0x4, fixed_abs, tag = 'smem constant byte address 0x4 - core index']
  #allocation1 [shape = 'u32[144,128]{1,0:T(1,128)}', space=vmem, size = 0x12000, scoped, tag = 'internal scratch']
  %s0 = inlined_call_operand.hbm [shape: bf16[16,256], index: 0, kind: input, shape index: {}]
  %s1 = inlined_call_operand.hbm [shape: bf16[256,128], index: 1, kind: input, shape index: {}]
  %s2 = inlined_call_operand.vmem [shape: f32[1,128], index: 2, kind: input, shape index: {}]
  %s3 = inlined_call_operand.hbm [shape: f32[16,128], index: 3, kind: output, shape index: {}]
  %s4 = sld [smem:[#allocation0]]
  $region57: #{tpu_custom_call.1} parent=0
    _
  %s6 = ssub.s32 1, %s4
  %s7 = scalar_select 0, %s6, %s4
  $region1: #{tpu_custom_call.1} parent=0
    #allocation2 [shape = 'u8[8192]{0}', space=vmem, size = 0x2000, scoped, tag = 'input window, operand 0']
    #allocation3 [shape = 's32[2]{0}', space=sflag, size = 0x8, scoped, tag = 'scoped memory for tpu_custom_call.1']
    #allocation4 [shape = 's32[2]{0}', space=sflag, size = 0x8, scoped, tag = 'scoped memory for tpu_custom_call.1']
    #allocation5 [shape = 'u8[65536]{0}', space=vmem, size = 0x10000, scoped, tag = 'input window, operand 1']
    #allocation6 [shape = 's32[2]{0}', space=sflag, size = 0x8, scoped, tag = 'scoped memory for tpu_custom_call.1']
    #allocation7 [shape = 'u8[8192]{0}', space=vmem, size = 0x2000, scoped, tag = 'output window, operand 0, single buffered']
    %8 = vsyncpa [#allocation3], 0
    %s9 = scalar_lea.sflag [#allocation3], 1
    %10 = vsyncpa %s9, 0
    %11 = vsyncpa [#allocation6], 0
    %s12 = scalar_lea.sflag [#allocation6], 1
    %13 = vsyncpa %s12, 0
    %14 = vsyncpa [#allocation4], 0
    loop: start=0, step=1, limit=4
    $region2: #{tpu_custom_call.1} parent=1 // loop_pre_header
      _
    $region3: #{tpu_custom_call.1} parent=1 // loop_header
      %s16 = sphi 0, %s20
      %p17 = scmp.ge.s32.totalorder %s16, 4
      %s23 = sphi 0, %s42
      %s24 = sphi 0, %s38
      %s25 = sphi 0, %s34
      %s26 = sphi 0, %s23
      %s27 = sphi 0, %s24
      %s28 = sphi 0, %s25
      %s29 = sphi 0, %s26
      %s30 = sphi 0, %s27
      %s31 = sphi 0, %s28
      %s47 = sphi 0, %s49
      %s50 = sphi 0, %s47
      %s51 = sphi 0, %s50
      %s67 = sphi 0, %s51
      %s75 = sphi 0, %s77
      %s78 = sphi 0, %s75
      %s79 = sphi 0, %s78
      %s95 = sphi 0, %s79
      %s101 = sphi 0, %s103
      %s104 = sphi 0, %s101
      %s105 = sphi 0, %s104
      %s121 = sphi 0, %s105
      %s129 = sphi 0, %s131
      %s132 = sphi 0, %s129
      %s133 = sphi 0, %s132
      %s149 = sphi 0, %s133
    $region4: #{tpu_custom_call.1} parent=1 // loop_header_branch
      %19 = sbr.rel (%p17) target = $region8
    $region5: #{tpu_custom_call.1} parent=1 // loop_body
      %s21 = ssub.s32 %s16, 1
      %s22 = ssub.s32 %s16, 2
      %s32 = sadd.s32 1, %s25
      %p33 = scmp.ge.s32.totalorder %s32, 2
      %s34 = scalar_select %p33, 0, %s32
      %s35 = sadd.s32 1, %s24
      %s36 = scalar_select %p33, %s35, %s24
      %p37 = scmp.ge.s32.totalorder %s36, 1
      %s38 = scalar_select %p37, 0, %s36
      %s39 = sadd.s32 1, %s23
      %s40 = scalar_select %p37, %s39, %s23
      %p41 = scmp.ge.s32.totalorder %s40, 1
      %s42 = scalar_select %p41, 0, %s40
      %s43 = ssub.s32 %s23, %s42
      %s44 = ssub.s32 %s25, %s34
      %s45 = sor.u32 %s43, %s44
      %p46 = scmp.eq.s32.totalorder %s45, 0
      %s48 = sadd.s32 %s47, 1
      %s49 = scalar_select %p46, %s47, %s48
      %p52 = pneg %p46
      %p53 = scmp.eq.s32.totalorder %s16, 1
      %p54 = por %p52, %p53
      %p55 = scmp.ne.s32.totalorder %s47, %s50
      %p56 = scmp.eq.s32.totalorder %s16, 0
      %p57 = por %p55, %p56
      %p58 = scmp.ne.s32.totalorder %s47, %s50
      %p59 = scmp.eq.s32.totalorder %s21, 1
      %p60 = por %p58, %p59
      %p61 = scmp.ne.s32.totalorder %s50, %s51
      %p62 = scmp.eq.s32.totalorder %s21, 0
      %p63 = por %p61, %p62
      %p64 = scmp.ne.s32.totalorder %s50, %s51
      %p65 = scmp.eq.s32.totalorder %s22, 1
      %p66 = por %p64, %p65
      %p68 = scmp.ne.s32.totalorder %s51, %s67
      %p69 = scmp.eq.s32.totalorder %s22, 0
      %p70 = por %p68, %p69
      %s71 = ssub.s32 %s25, %s34
      %s72 = ssub.s32 %s24, %s38
      %s73 = sor.u32 %s71, %s72
      %p74 = scmp.eq.s32.totalorder %s73, 0
      %s76 = sadd.s32 %s75, 1
      %s77 = scalar_select %p74, %s75, %s76
      %p80 = pneg %p74
      %p81 = scmp.eq.s32.totalorder %s16, 1
      %p82 = por %p80, %p81
      %p83 = scmp.ne.s32.totalorder %s75, %s78
      %p84 = scmp.eq.s32.totalorder %s16, 0
      %p85 = por %p83, %p84
      %p86 = scmp.ne.s32.totalorder %s75, %s78
      %p87 = scmp.eq.s32.totalorder %s21, 1
      %p88 = por %p86, %p87
      %p89 = scmp.ne.s32.totalorder %s78, %s79
      %p90 = scmp.eq.s32.totalorder %s21, 0
      %p91 = por %p89, %p90
      %p92 = scmp.ne.s32.totalorder %s78, %s79
      %p93 = scmp.eq.s32.totalorder %s22, 1
      %p94 = por %p92, %p93
      %p96 = scmp.ne.s32.totalorder %s79, %s95
      %p97 = scmp.eq.s32.totalorder %s22, 0
      %p98 = por %p96, %p97
      %s99 = ssub.s32 %s24, %s38
      %p100 = scmp.eq.s32.totalorder %s99, 0
      %s102 = sadd.s32 %s101, 1
      %s103 = scalar_select %p100, %s101, %s102
      %p106 = pneg %p100
      %p107 = scmp.eq.s32.totalorder %s16, 1
      %p108 = por %p106, %p107
      %p109 = scmp.ne.s32.totalorder %s101, %s104
      %p110 = scmp.eq.s32.totalorder %s16, 0
      %p111 = por %p109, %p110
      %p112 = scmp.ne.s32.totalorder %s101, %s104
      %p113 = scmp.eq.s32.totalorder %s21, 1
      %p114 = por %p112, %p113
      %p115 = scmp.ne.s32.totalorder %s104, %s105
      %p116 = scmp.eq.s32.totalorder %s21, 0
      %p117 = por %p115, %p116
      %p118 = scmp.ne.s32.totalorder %s104, %s105
      %p119 = scmp.eq.s32.totalorder %s22, 1
      %p120 = por %p118, %p119
      %p122 = scmp.ne.s32.totalorder %s105, %s121
      %p123 = scmp.eq.s32.totalorder %s22, 0
      %p124 = por %p122, %p123
      %s125 = ssub.s32 %s23, %s42
      %s126 = ssub.s32 %s24, %s38
      %s127 = sor.u32 %s125, %s126
      %p128 = scmp.eq.s32.totalorder %s127, 0
      %s130 = sadd.s32 %s129, 1
      %s131 = scalar_select %p128, %s129, %s130
      %p134 = pneg %p128
      %p135 = scmp.eq.s32.totalorder %s16, 1
      %p136 = por %p134, %p135
      %p137 = scmp.ne.s32.totalorder %s129, %s132
      %p138 = scmp.eq.s32.totalorder %s16, 0
      %p139 = por %p137, %p138
      %p140 = scmp.ne.s32.totalorder %s129, %s132
      %p141 = scmp.eq.s32.totalorder %s21, 1
      %p142 = por %p140, %p141
      %p143 = scmp.ne.s32.totalorder %s132, %s133
      %p144 = scmp.eq.s32.totalorder %s21, 0
      %p145 = por %p143, %p144
      %p146 = scmp.ne.s32.totalorder %s132, %s133
      %p147 = scmp.eq.s32.totalorder %s22, 1
      %p148 = por %p146, %p147
      %p150 = scmp.ne.s32.totalorder %s133, %s149
      %p151 = scmp.eq.s32.totalorder %s22, 0
      %p152 = por %p150, %p151
      %p153 = scmp.le.s32.totalorder 1, %s16
      %p154 = scmp.lt.s32.totalorder %s16, 3
      %p155 = pnand %p153, %p154
      %p156 = pneg %p155
      // Predicated region
      $region9: #{tpu_custom_call.1} parent=5 // pred_check
        _
      $region10: #{tpu_custom_call.1} parent=5 // pred_check_branch
        %158 = sbr.rel (%p155) target = $region12
      $region11: #{tpu_custom_call.1} parent=5 // pred_region
        %s159 = ssub.s32 %s16, 1
        // Predicated region
        $region13: #{tpu_custom_call.1} parent=11 // pred_check
          %p160 = pneg %p117
        $region14: #{tpu_custom_call.1} parent=11 // pred_check_branch
          %162 = sbr.rel (%p160) target = $region16
        $region15: #{tpu_custom_call.1} parent=11 // pred_region
          %p163 = scmp.lt.s32.totalorder %s27, 0
          %s164 = scalar_select %p163, %s27, 0
          %s165 = scalar_lea.vmem %s2, %s164
        $region16: #{tpu_custom_call.1} parent=11 // pred_fallthru
          _
      $region12: #{tpu_custom_call.1} parent=5 // pred_fallthru
        _
      %p166 = scmp.lt.s32.totalorder %s16, 2
      // Predicated region
      $region17: #{tpu_custom_call.1} parent=5 // pred_check
        %p167 = pneg %p166
      $region18: #{tpu_custom_call.1} parent=5 // pred_check_branch
        %169 = sbr.rel (%p167) target = $region20
      $region19: #{tpu_custom_call.1} parent=5 // pred_region
        // Predicated region
        $region21: #{tpu_custom_call.1} parent=19 // pred_check
          %p170 = pneg %p57
        $region22: #{tpu_custom_call.1} parent=19 // pred_check_branch
          %172 = sbr.rel (%p170) target = $region24
        $region23: #{tpu_custom_call.1} parent=19 // pred_region
          %s173 = sand.u32 %s47, 1
          %s174 = scalar_lea.sflag [#allocation3], %s173
          %s175 = sand.u32 %s47, 1
          %s176 = smul.addr %s175, 8
          %s177 = scalar_lea.vmem [#allocation2], %s176
          %s178 = smul.u32 2, %s23
          %s180 = ssub.s32 128, 128
          %181 = vsyncadd %s174, %s180
          %s182 = smul.addr %s178, 2
          %s183 = sadd.s32 %s25, %s182
          %s184 = smul.addr %s183, 64
          %s185 = scalar_lea.hbm %s0, %s184
          %s186 = sshll.u32 %s177, 4
          %s187 = int_to_ptr.vmem [resolvable:$true] %s186
          %192 = dma.hbm_to_vmem [thread:$0]  %s185, 128, %s187, %s174, 128, 64, 4
        $region24: #{tpu_custom_call.1} parent=19 // pred_fallthru
          _
        // Predicated region
        $region25: #{tpu_custom_call.1} parent=19 // pred_check
          %p193 = pneg %p85
        $region26: #{tpu_custom_call.1} parent=19 // pred_check_branch
          %195 = sbr.rel (%p193) target = $region28
        $region27: #{tpu_custom_call.1} parent=19 // pred_region
          %s196 = sand.u32 %s75, 1
          %s197 = scalar_lea.sflag [#allocation6], %s196
          %s198 = sand.u32 %s75, 1
          %s199 = smul.addr %s198, 64
          %s200 = scalar_lea.vmem [#allocation5], %s199
          %s201 = smul.u32 16, %s25
          %s203 = ssub.s32 1024, 1024
          %204 = vsyncadd %s197, %s203
          %s205 = sadd.s32 %s24, %s201
          %s206 = smul.addr %s205, 64
          %s207 = scalar_lea.hbm %s1, %s206
          %s208 = sshll.u32 %s200, 4
          %s209 = int_to_ptr.vmem [resolvable:$true] %s208
          %214 = dma.hbm_to_vmem [thread:$0]  %s207, 1024, %s209, %s197, 64, 64, 4
        $region28: #{tpu_custom_call.1} parent=19 // pred_fallthru
          _
      $region20: #{tpu_custom_call.1} parent=5 // pred_fallthru
        _
      %p215 = scmp.le.s32.totalorder 1, %s16
      %p216 = scmp.lt.s32.totalorder %s16, 3
      %p217 = pnand %p215, %p216
      %p218 = pneg %p217
      // Predicated region
      $region29: #{tpu_custom_call.1} parent=5 // pred_check
        _
      $region30: #{tpu_custom_call.1} parent=5 // pred_check_branch
        %220 = sbr.rel (%p217) target = $region32
      $region31: #{tpu_custom_call.1} parent=5 // pred_region
        %s221 = ssub.s32 %s16, 1
        %s222 = sand.u32 %s50, 1
        %s223 = scalar_lea.sflag [#allocation3], %s222
        %s224 = sand.u32 %s50, 1
        %s225 = smul.addr %s224, 8
        %s226 = scalar_lea.vmem [#allocation2], %s225
        // Predicated region
        $region33: #{tpu_custom_call.1} parent=31 // pred_check
          %p227 = pneg %p63
        $region34: #{tpu_custom_call.1} parent=31 // pred_check_branch
          %229 = sbr.rel (%p227) target = $region36
        $region35: #{tpu_custom_call.1} parent=31 // pred_region
          %230 = dma.done %s223, 128
        $region36: #{tpu_custom_call.1} parent=31 // pred_fallthru
          _
        %s231 = sand.u32 %s78, 1
        %s232 = scalar_lea.sflag [#allocation6], %s231
        %s233 = sand.u32 %s78, 1
        %s234 = smul.addr %s233, 64
        %s235 = scalar_lea.vmem [#allocation5], %s234
        // Predicated region
        $region37: #{tpu_custom_call.1} parent=31 // pred_check
          %p236 = pneg %p91
        $region38: #{tpu_custom_call.1} parent=31 // pred_check_branch
          %238 = sbr.rel (%p236) target = $region40
        $region39: #{tpu_custom_call.1} parent=31 // pred_region
          %239 = dma.done %s232, 1024
        $region40: #{tpu_custom_call.1} parent=31 // pred_fallthru
          _
        %s240 = sand.u32 %s50, 1
        %s241 = scalar_lea.sflag [#allocation3], %s240
        %s242 = sand.u32 %s50, 1
        %s243 = smul.addr %s242, 8
        %s244 = scalar_lea.vmem [#allocation2], %s243
        %p245 = pneg %p63
        %p246 = pneg %p60
        %s247 = sand.u32 %s78, 1
        %s248 = scalar_lea.sflag [#allocation6], %s247
        %s249 = sand.u32 %s78, 1
        %s250 = smul.addr %s249, 64
        %s251 = scalar_lea.vmem [#allocation5], %s250
        %p252 = pneg %p91
        %p253 = pneg %p88
        %p254 = scmp.lt.s32.totalorder %s27, 0
        %s255 = scalar_select %p254, %s27, 0
        %s256 = scalar_lea.vmem %s2, %s255
        %p257 = pneg %p117
        %p258 = pneg %p114
        %p259 = pneg %p145
        %p260 = pneg %p142
        %s261 = smul.u32 2, %s26
        %s262 = smul.u32 16, %s28
        %p263 = scmp.lt.s32.totalorder %s27, 0
        %s264 = scalar_select %p263, %s27, 0
        %s265 = scalar_lea.vmem %s2, %s264
        %s266 = smul.u32 2, %s26
        %p268 = scmp.eq.s32.totalorder %s28, 0
        // Predicated region
        $region41: #{tpu_custom_call.1} parent=31 // pred_check
          %p269 = pneg %p268
        $region42: #{tpu_custom_call.1} parent=31 // pred_check_branch
          %271 = sbr.rel (%p269) target = $region44
        $region43: #{tpu_custom_call.1} parent=31 // pred_region
          %v272 = vld [vmem:[%s265] sm:$0x1]
          %v274 = vlaneseq
          %v275 = vshrl.u32 %v274, 7
          %v276 = vsub.s32 0, %v275
          %v277 = vrot.slane %v272, %v276
          %279 = vst [vmem:[#allocation7] sm:$0xff] %v277
          %280 = vst [vmem:[#allocation7 + $0x8] sm:$0xff] %v277
        $region44: #{tpu_custom_call.1} parent=31 // pred_fallthru
          _
        %v281 = vld [vmem:[#allocation7] sm:$0xff]
        %v282 = vld [vmem:[#allocation7 + $0x8] sm:$0xff]
        %v283 = vld [vmem:[%s226] sm:$0xf]
        %v284 = vld [vmem:[%s226 + $0x4] sm:$0xf]
        %v285 = vld [vmem:[%s235] sm:$0xf]
        %v286 = vld [vmem:[%s235 + $0x4] sm:$0xf]
        %v287 = vld [vmem:[%s235 + $0x8] sm:$0xf]
        %v288 = vld [vmem:[%s235 + $0xc] sm:$0xf]
        %v289 = vld [vmem:[%s235 + $0x10] sm:$0xf]
        %v290 = vld [vmem:[%s235 + $0x14] sm:$0xf]
        %v291 = vld [vmem:[%s235 + $0x18] sm:$0xf]
        %v292 = vld [vmem:[%s235 + $0x1c] sm:$0xf]
        %v293 = vld [vmem:[%s235 + $0x20] sm:$0xf]
        %v294 = vld [vmem:[%s235 + $0x24] sm:$0xf]
        %v295 = vld [vmem:[%s235 + $0x28] sm:$0xf]
        %v296 = vld [vmem:[%s235 + $0x2c] sm:$0xf]
        %v297 = vld [vmem:[%s235 + $0x30] sm:$0xf]
        %v298 = vld [vmem:[%s235 + $0x34] sm:$0xf]
        %v299 = vld [vmem:[%s235 + $0x38] sm:$0xf]
        %v300 = vld [vmem:[%s235 + $0x3c] sm:$0xf]
        %v303 = vunpack.c.l.b16 %v283
        %v304 = vunpack.c.l.b16 %v284
        %v305 = vpack.c.b16 %v304, %v303
        %v323 = vunpack.c.l.b16 %v285
        %v324 = vunpack.c.l.b16 %v286
        %v325 = vunpack.c.l.b16 %v287
        %v326 = vunpack.c.l.b16 %v288
        %v327 = vunpack.c.l.b16 %v289
        %v328 = vunpack.c.l.b16 %v290
        %v329 = vunpack.c.l.b16 %v291
        %v330 = vunpack.c.l.b16 %v292
        %v331 = vunpack.c.l.b16 %v293
        %v332 = vunpack.c.l.b16 %v294
        %v333 = vunpack.c.l.b16 %v295
        %v334 = vunpack.c.l.b16 %v296
        %v335 = vunpack.c.l.b16 %v297
        %v336 = vunpack.c.l.b16 %v298
        %v337 = vunpack.c.l.b16 %v299
        %v338 = vunpack.c.l.b16 %v300
        %v339 = vpack.c.b16 %v324, %v323
        %v340 = vpack.c.b16 %v326, %v325
        %v341 = vpack.c.b16 %v328, %v327
        %v342 = vpack.c.b16 %v330, %v329
        %v343 = vpack.c.b16 %v332, %v331
        %v344 = vpack.c.b16 %v334, %v333
        %v345 = vpack.c.b16 %v336, %v335
        %v346 = vpack.c.b16 %v338, %v337
        %355 = vmatprep.subr.bf16.mxu0 0
        %356 = vmatpush1.bf16.msra.mxu0 %v346
        %357 = vmatprep.subr.bf16.mxu0 0
        %358 = vmatpush1.bf16.msra.mxu0 %v345
        %359 = vmatprep.subr.bf16.mxu0 0
        %360 = vmatpush1.bf16.msra.mxu0 %v344
        %361 = vmatprep.subr.bf16.mxu0 0
        %362 = vmatpush1.bf16.msra.mxu0 %v343
        %363 = vmatprep.subr.bf16.mxu0 0
        %364 = vmatpush1.bf16.msra.mxu0 %v342
        %365 = vmatprep.subr.bf16.mxu0 0
        %366 = vmatpush1.bf16.msra.mxu0 %v341
        %367 = vmatprep.subr.bf16.mxu0 0
        %368 = vmatpush1.bf16.msra.mxu0 %v340
        %369 = vmatprep.subr.bf16.mxu0 0
        %370 = vmatpush1.bf16.msra.mxu0 %v339
        %371 = vmatprep.subr.bf16.mxu0 0
        %372 = vmatpush2.bf16.msra.mxu0 0
        %373 = vmatprep.subr.bf16.mxu0 0
        %374 = vmatpush2.bf16.msra.mxu0 0
        %375 = vmatprep.subr.bf16.mxu0 0
        %376 = vmatpush2.bf16.msra.mxu0 0
        %377 = vmatprep.subr.bf16.mxu0 0
        %378 = vmatpush2.bf16.msra.mxu0 0
        %379 = vmatprep.subr.bf16.mxu0 0
        %380 = vmatpush2.bf16.msra.mxu0 0
        %381 = vmatprep.subr.bf16.mxu0 0
        %382 = vmatpush2.bf16.msra.mxu0 0
        %383 = vmatprep.subr.bf16.mxu0 0
        %384 = vmatpush2.bf16.msra.mxu0 0
        %385 = vmatprep.subr.bf16.mxu0 0
        %386 = vmatpush2.bf16.msra.mxu0 0
        %387 = vmatprep.mubr.bf16.mxu0 0
        %388 = vmatmul.mubr.bf16.gmra.mxu0 %v305
        %v389 = vpop.f32.mrf.mxu0
        %v390 = vadd.f32 0.0, %v389
        %v391 = vpop.f32.mrf.mxu0
        %v392 = vpop.f32.mrf.mxu0
        %v393 = vadd.f32 0.0, %v392
        %v394 = vpop.f32.mrf.mxu0
        %395 = vdwg.mxu0
        %v396 = vadd.f32 %v281, %v390
        %v397 = vadd.f32 %v282, %v393
        %398 = vst [vmem:[#allocation7] sm:$0xff] %v396
        %399 = vst [vmem:[#allocation7 + $0x8] sm:$0xff] %v397
        // Predicated region
        $region45: #{tpu_custom_call.1} parent=31 // pred_check
          %p400 = pneg %p142
        $region46: #{tpu_custom_call.1} parent=31 // pred_check_branch
          %402 = sbr.rel (%p400) target = $region48
        $region47: #{tpu_custom_call.1} parent=31 // pred_region
          %s403 = smul.u32 2, %s26
          %s405 = ssub.s32 256, 256
          %406 = vsyncadd [#allocation4], %s405
          %s407 = sadd.s32 %s27, %s403
          %s408 = smul.addr %s407, 128
          %s409 = scalar_lea.hbm %s3, %s408
          %s410 = sshll.u32 [#allocation7], 4
          %s411 = int_to_ptr.vmem [resolvable:$true] %s410
          %416 = dma.vmem_to_hbm [thread:$0]  %s411, 256, %s409, [#allocation4], 128, 128, 8
        $region48: #{tpu_custom_call.1} parent=31 // pred_fallthru
          _
        // Predicated region
        $region49: #{tpu_custom_call.1} parent=31 // pred_check
          %p417 = pneg %p142
        $region50: #{tpu_custom_call.1} parent=31 // pred_check_branch
          %419 = sbr.rel (%p417) target = $region52
        $region51: #{tpu_custom_call.1} parent=31 // pred_region
          %420 = dma.done [#allocation4], 256
        $region52: #{tpu_custom_call.1} parent=31 // pred_fallthru
          _
      $region32: #{tpu_custom_call.1} parent=5 // pred_fallthru
        _
      %p421 = scmp.le.s32.totalorder 2, %s16
      // Predicated region
      $region53: #{tpu_custom_call.1} parent=5 // pred_check
        %p422 = pneg %p421
      $region54: #{tpu_custom_call.1} parent=5 // pred_check_branch
        %424 = sbr.rel (%p422) target = $region56
      $region55: #{tpu_custom_call.1} parent=5 // pred_region
        %s425 = ssub.s32 %s16, 2
      $region56: #{tpu_custom_call.1} parent=5 // pred_fallthru
        _
    $region6: #{tpu_custom_call.1} parent=1 // loop_footer
      %s20 = sadd.s32 1, %s16
    $region7: #{tpu_custom_call.1} parent=1 // loop_footer_branch
      %15 = sbr.rel target = $region3
    $region8: #{tpu_custom_call.1} parent=1 // loop_exit
      _
    %426 = vsyncpa [#allocation3], 1
    %s427 = scalar_lea.sflag [#allocation3], 1
    %428 = vsyncpa %s427, 1
    %429 = vsyncpa [#allocation6], 1
    %s430 = scalar_lea.sflag [#allocation6], 1
    %431 = vsyncpa %s430, 1
    %432 = vsyncpa [#allocation4], 1
    %s433 = scalar_lea.sflag [#allocation4], 1
    %434 = vsyncpa %s433, 1

</llo_original>
